<compile_context>
chip_gen: v7x
topology: tpu7x:2x2x1
jax: 0.10.0
libtpu: 0.0.40
codegen_flags: <defaults>
</compile_context>

<pallas_src>
import functools

import jax
import jax.numpy as jnp
from jax.experimental import pallas as pl
from jax.experimental.pallas import tpu as pltpu


def _kernel_both(tt_ref, first_ref, second_ref, targets_ref, out_ref, *, inv_b):
    """second=False path.

    tt_ref:      (1,)  f32 SMEM  -> T_turn flag in {0., 1.}
    first_ref:   (1,B) f32 VMEM  -> first-half logits
    second_ref:  (1,B) f32 VMEM  -> second-half logits
    targets_ref: (1,B) f32 VMEM
    out_ref:     (1,1) f32 SMEM
    inv_b:       compile-time constant 1/B
    """
    tt = tt_ref[0]

    x1 = first_ref[...]      # (1, B)
    x2 = second_ref[...]     # (1, B)
    t = targets_ref[...]     # (1, B)

    # Stable softplus pieces (EUP) for both halves.
    sp1 = jnp.maximum(x1, 0.0) + jnp.log1p(jnp.exp(-jnp.abs(x1)))
    sp2 = jnp.maximum(x2, 0.0) + jnp.log1p(jnp.exp(-jnp.abs(x2)))

    # first half : bce(x1, t)                     = sp1 - x1*t
    # second half: bce(x2, t or 1-t depending tt) = sp2 - tt*x2 - (1-2tt)*x2*t
    elem = (sp1 - x1 * t) + (sp2 - tt * x2 - (1.0 - 2.0 * tt) * (x2 * t))

    # mean(first) + mean(second) == sum(elem) / B  (both halves have B elems)
    out_ref[0, 0] = jnp.sum(elem) * inv_b


def _kernel_second(tt_ref, second_ref, targets_ref, out_ref, *, inv_b):
    """second=True path (first-half preds never enter the kernel).

    tt_ref:      (1,)  f32 SMEM
    second_ref:  (1,B) f32 VMEM
    targets_ref: (1,B) f32 VMEM
    out_ref:     (1,1) f32 SMEM
    """
    tt = tt_ref[0]

    x = second_ref[...]      # (1, B)
    t = targets_ref[...]     # (1, B)

    sp = jnp.maximum(x, 0.0) + jnp.log1p(jnp.exp(-jnp.abs(x)))
    elem = sp - tt * x - (1.0 - 2.0 * tt) * (x * t)

    out_ref[0, 0] = jnp.sum(elem) * inv_b


@functools.partial(jax.jit, static_argnames=("second",))
def discriminator_loss(first_preds, second_preds, targets, t_turn_flag, *, second):
    """Pallas-backed equivalent of DiscriminatorLoss(second).forward(...).

    Args:
      first_preds:  [B, 1] float32 logits from the first-half discriminator.
      second_preds: [B, 1] float32 logits from the second-half discriminator.
      targets:      [B, 1] float32 labels in {0, 1}.
      t_turn_flag:  scalar (Python bool/int or JAX 0/1) — invert targets for
                    the second-half loss.
      second:       static bool — if True, only the second-half loss is returned.

    Returns:
      float32 scalar loss.
    """
    B = targets.shape[0]
    inv_b = float(1.0 / B)

    # lane-dense layout: batch on the 128-lane axis
    t_row = targets.reshape(1, B).astype(jnp.float32)
    s_row = second_preds.reshape(1, B).astype(jnp.float32)
    tt = jnp.asarray(t_turn_flag, dtype=jnp.float32).reshape(1)

    vmem_spec = pl.BlockSpec(memory_space=pltpu.VMEM)
    smem_spec = pl.BlockSpec(memory_space=pltpu.SMEM)
    out_shape = jax.ShapeDtypeStruct((1, 1), jnp.float32)

    if second:
        out = pl.pallas_call(
            functools.partial(_kernel_second, inv_b=inv_b),
            out_shape=out_shape,
            in_specs=[smem_spec, vmem_spec, vmem_spec],
            out_specs=smem_spec,
        )(tt, s_row, t_row)
    else:
        f_row = first_preds.reshape(1, B).astype(jnp.float32)
        out = pl.pallas_call(
            functools.partial(_kernel_both, inv_b=inv_b),
            out_shape=out_shape,
            in_specs=[smem_spec, vmem_spec, vmem_spec, vmem_spec],
            out_specs=smem_spec,
        )(tt, f_row, s_row, t_row)

    return out[0, 0]


def _reference_loss(first_preds, second_preds, targets, t_turn, second):
    """Pure-JAX reference mirroring the PyTorch module (test-only, not jitted)."""
    def bce(x, t):
        return jnp.mean(jnp.maximum(x, 0.0) - x * t + jnp.log1p(jnp.exp(-jnp.abs(x))))

    t2 = 1.0 - targets if t_turn else targets
    if not second:
        return bce(first_preds, targets) + bce(second_preds, t2)
    return bce(second_preds, t2)


if __name__ == "__main__":
    key = jax.random.PRNGKey(0)
    k1, k2, k3 = jax.random.split(key, 3)

    B = 8  # batch of latent-pair comparisons; discriminator outputs one logit each
    first_preds = jax.random.normal(k1, (B, 1), dtype=jnp.float32)
    second_preds = jax.random.normal(k2, (B, 1), dtype=jnp.float32)
    targets = (jax.random.uniform(k3, (B, 1)) > 0.5).astype(jnp.float32)

    ok = True
    for second in (False, True):
        for t_turn in (False, True):
            loss = discriminator_loss(
                first_preds, second_preds, targets, t_turn, second=second
            )
            loss = jax.block_until_ready(loss)
            ref = _reference_loss(first_preds, second_preds, targets, t_turn, second)
            if not jnp.allclose(loss, ref, rtol=1e-5, atol=1e-5):
                ok = False

    if ok:
        print("KERNEL_OK")
</pallas_src>

<mosaic_0001>
module attributes {stable_mosaic.version = 11 : i64} {
  func.func @_kernel_both(%arg0: memref<1xf32, #tpu.memory_space<smem>>, %arg1: memref<1x8xf32, #tpu.memory_space<vmem>>, %arg2: memref<1x8xf32, #tpu.memory_space<vmem>>, %arg3: memref<1x8xf32, #tpu.memory_space<vmem>>, %arg4: memref<1x1xf32, #tpu.memory_space<smem>>) attributes {dimension_semantics = [], scalar_prefetch = 0 : i64, scratch_operands = 0 : i64, tpu.core_type = #tpu.core_type<tc>} {
    %c0 = arith.constant 0 : index
    %0 = memref.load %arg0[%c0] : memref<1xf32, #tpu.memory_space<smem>>
    %c0_0 = arith.constant 0 : index
    %c0_1 = arith.constant 0 : index
    %1 = vector.load %arg1[%c0_0, %c0_1] : memref<1x8xf32, #tpu.memory_space<vmem>>, vector<1x8xf32>
    %c0_2 = arith.constant 0 : index
    %c0_3 = arith.constant 0 : index
    %2 = vector.load %arg2[%c0_2, %c0_3] : memref<1x8xf32, #tpu.memory_space<vmem>>, vector<1x8xf32>
    %c0_4 = arith.constant 0 : index
    %c0_5 = arith.constant 0 : index
    %3 = vector.load %arg3[%c0_4, %c0_5] : memref<1x8xf32, #tpu.memory_space<vmem>>, vector<1x8xf32>
    %cst = arith.constant 0.000000e+00 : f32
    %4 = vector.broadcast %cst : f32 to vector<1x8xf32>
    %5 = arith.maximumf %1, %4 : vector<1x8xf32>
    %6 = math.absf %1 : vector<1x8xf32>
    %cst_6 = arith.constant 0.000000e+00 : f32
    %7 = vector.broadcast %cst_6 : f32 to vector<1x8xf32>
    %8 = arith.subf %7, %6 : vector<1x8xf32>
    %9 = math.exp %8 : vector<1x8xf32>
    %10 = math.log1p %9 : vector<1x8xf32>
    %11 = arith.addf %5, %10 : vector<1x8xf32>
    %cst_7 = arith.constant 0.000000e+00 : f32
    %12 = vector.broadcast %cst_7 : f32 to vector<1x8xf32>
    %13 = arith.maximumf %2, %12 : vector<1x8xf32>
    %14 = math.absf %2 : vector<1x8xf32>
    %cst_8 = arith.constant 0.000000e+00 : f32
    %15 = vector.broadcast %cst_8 : f32 to vector<1x8xf32>
    %16 = arith.subf %15, %14 : vector<1x8xf32>
    %17 = math.exp %16 : vector<1x8xf32>
    %18 = math.log1p %17 : vector<1x8xf32>
    %19 = arith.addf %13, %18 : vector<1x8xf32>
    %20 = arith.mulf %1, %3 : vector<1x8xf32>
    %21 = arith.subf %11, %20 : vector<1x8xf32>
    %22 = vector.broadcast %0 : f32 to vector<1x8xf32>
    %23 = arith.mulf %22, %2 : vector<1x8xf32>
    %24 = arith.subf %19, %23 : vector<1x8xf32>
    %cst_9 = arith.constant 2.000000e+00 : f32
    %25 = arith.mulf %cst_9, %0 : f32
    %cst_10 = arith.constant 1.000000e+00 : f32
    %26 = arith.subf %cst_10, %25 : f32
    %27 = arith.mulf %2, %3 : vector<1x8xf32>
    %28 = vector.broadcast %26 : f32 to vector<1x8xf32>
    %29 = arith.mulf %28, %27 : vector<1x8xf32>
    %30 = arith.subf %24, %29 : vector<1x8xf32>
    %31 = arith.addf %21, %30 : vector<1x8xf32>
    %32 = vector.shape_cast %31 : vector<1x8xf32> to vector<1x1x8xf32>
    %cst_11 = arith.constant dense<0.000000e+00> : vector<1xf32>
    %33 = vector.multi_reduction <add>, %32, %cst_11 [1, 2] : vector<1x1x8xf32> to vector<1xf32>
    %34 = vector.shape_cast %33 : vector<1xf32> to vector<1x1x1xf32>
    %35 = vector.extract %34[0, 0, 0] : f32 from vector<1x1x1xf32>
    %cst_12 = arith.constant 1.250000e-01 : f32
    %36 = arith.mulf %35, %cst_12 : f32
    %c0_13 = arith.constant 0 : index
    %c0_14 = arith.constant 0 : index
    %37 = memref.load %arg4[%c0_13, %c0_14] : memref<1x1xf32, #tpu.memory_space<smem>>
    memref.store %36, %arg4[%c0_13, %c0_14] : memref<1x1xf32, #tpu.memory_space<smem>>
    return
  }
}

</mosaic_0001>

<llo_original>
// kernel: discriminator_loss.1
$region0: #{discriminator_loss.1}
  #allocation0 [shape = 'u32[]', space=smem, size = 0x4, offset = 0x4, fixed_abs, tag = 'smem constant byte address 0x4 - core index']
  #allocation1 [shape = 'u32[144,128]{1,0:T(1,128)}', space=vmem, size = 0x12000, scoped, tag = 'internal scratch']
  #allocation2 [shape = 'f32[1]{0:T(128)S(6)}', space=smem, size = 0x200, scoped, tag = 'scoped memory for discriminator_loss.1']
  %s0 = inlined_call_operand.<no memory space> [shape: f32[1], index: 0, kind: input, shape index: {}]
  %s1 = inlined_call_operand.vmem [shape: f32[1,8], index: 1, kind: input, shape index: {}]
  %s2 = inlined_call_operand.vmem [shape: f32[1,8], index: 2, kind: input, shape index: {}]
  %s3 = inlined_call_operand.vmem [shape: f32[1,8], index: 3, kind: input, shape index: {}]
  %s4 = inlined_call_operand.hbm [shape: f32[1,1], index: 4, kind: output, shape index: {}]
  %s5 = sld [smem:[#allocation0]]
  $region26: #{discriminator_loss.1} parent=0
    _
  %s7 = ssub.s32 1, %s5
  %s8 = scalar_select 0, %s7, %s5
  %9 = sst [smem:[#allocation2]] %s0
  $region1: #{discriminator_loss.1} parent=0
    #allocation3 [shape = 'u8[512]{0}', space=smem, size = 0x200, scoped, tag = 'output window, operand 0, single buffered']
    #allocation4 [shape = 's32[1]{0}', space=sflag, size = 0x4, scoped, tag = 'scoped memory for discriminator_loss.1']
    %10 = vsyncpa [#allocation4], 0
    // Predicated region
    $region2: #{discriminator_loss.1} parent=1 // pred_check
      _
    $region3: #{discriminator_loss.1} parent=1 // pred_check_branch
      %12 = sbr.rel (0) target = $region5
    $region4: #{discriminator_loss.1} parent=1 // pred_region
      _
    $region5: #{discriminator_loss.1} parent=1 // pred_fallthru
      _
    // Predicated region
    $region6: #{discriminator_loss.1} parent=1 // pred_check
      _
    $region7: #{discriminator_loss.1} parent=1 // pred_check_branch
      %14 = sbr.rel (0) target = $region9
    $region8: #{discriminator_loss.1} parent=1 // pred_region
      _
    $region9: #{discriminator_loss.1} parent=1 // pred_fallthru
      _
    // Predicated region
    $region10: #{discriminator_loss.1} parent=1 // pred_check
      _
    $region11: #{discriminator_loss.1} parent=1 // pred_check_branch
      %16 = sbr.rel (0) target = $region13
    $region12: #{discriminator_loss.1} parent=1 // pred_region
      _
    $region13: #{discriminator_loss.1} parent=1 // pred_fallthru
      _
    // Predicated region
    $region14: #{discriminator_loss.1} parent=1 // pred_check
      _
    $region15: #{discriminator_loss.1} parent=1 // pred_check_branch
      %18 = sbr.rel (0) target = $region17
    $region16: #{discriminator_loss.1} parent=1 // pred_region
      _
    $region17: #{discriminator_loss.1} parent=1 // pred_fallthru
      _
    %s19 = sld [smem:[#allocation2]]
    %v20 = vld [vmem:[%s1] sm:$0x1]
    %v21 = vld [vmem:[%s2] sm:$0x1]
    %v22 = vld [vmem:[%s3] sm:$0x1]
    %v23 = vmax.f32 %v20, 0.0
    %v24 = vand.u32 2147483647, %v20
    %v25 = vsub.f32 0.0, %v24
    %v26 = vmul.f32 %v25, 1.442695
    %v27 = vpow.pop %v26
    %v28 = vadd.f32 %v27, 1.0
    %v29 = vlog2.pop %v28
    %v30 = vmul.f32 %v29, 0.6931472
    %v31 = vmul.f32 -0.5, %v27
    %v32 = vadd.f32 %v31, 1.0
    %v33 = vmul.f32 %v32, %v27
    %v34 = vand.u32 2147483647, %v27
    %vm35 = vcmp.lt.f32.partialorder %v34, 0.0004427343
    %v36 = vsel %vm35, %v33, %v30
    %v37 = vadd.f32 %v23, %v36
    %v38 = vmax.f32 %v21, 0.0
    %v39 = vand.u32 2147483647, %v21
    %v40 = vsub.f32 0.0, %v39
    %v41 = vmul.f32 %v40, 1.442695
    %v42 = vpow.pop %v41
    %v43 = vadd.f32 %v42, 1.0
    %v44 = vlog2.pop %v43
    %v45 = vmul.f32 %v44, 0.6931472
    %v46 = vmul.f32 -0.5, %v42
    %v47 = vadd.f32 %v46, 1.0
    %v48 = vmul.f32 %v47, %v42
    %v49 = vand.u32 2147483647, %v42
    %vm50 = vcmp.lt.f32.partialorder %v49, 0.0004427343
    %v51 = vsel %vm50, %v48, %v45
    %v52 = vadd.f32 %v38, %v51
    %v53 = vmul.f32 %v20, %v22
    %v54 = vsub.f32 %v37, %v53
    %v55 = vstv %s19
    %v56 = vmul.f32 %v55, %v21
    %v57 = vsub.f32 %v52, %v56
    %s58 = smul.f32 %s19, 2.0
    %s59 = ssub.f32 1.0, %s58
    %v60 = vmul.f32 %v21, %v22
    %v61 = vstv %s59
    %v62 = vmul.f32 %v61, %v60
    %v63 = vsub.f32 %v57, %v62
    %v64 = vadd.f32 %v54, %v63
    %vm65 = vcmask 57344
    %v66 = vsel %vm65, %v64, 0.0
    %67 = vadd.xlane.f32.xlu0 %v66
    %v68 = vpop.xlane.xlu0 %67
    %v69 = vrot.slane %v68, 4
    %v70 = vadd.f32 %v68, %v69
    %v71 = vrot.slane %v70, 2
    %v72 = vadd.f32 %v70, %v71
    %v73 = vrot.slane %v72, 1
    %v74 = vadd.f32 %v72, %v73
    %s75 = vtos %v74
    %s76 = smul.f32 %s75, 0.125
    %s77 = scalar_lea.smem [#allocation3], 0
    %78 = sst [smem:[%s77]] %s76
    // Predicated region
    $region18: #{discriminator_loss.1} parent=1 // pred_check
      _
    $region19: #{discriminator_loss.1} parent=1 // pred_check_branch
      %80 = sbr.rel (0) target = $region21
    $region20: #{discriminator_loss.1} parent=1 // pred_region
      %s82 = ssub.s32 16, 16
      %83 = vsyncadd [#allocation4], %s82
      %86 = dma.smem_to_hbm [#allocation3], 16, %s4, [#allocation4]
    $region21: #{discriminator_loss.1} parent=1 // pred_fallthru
      _
    // Predicated region
    $region22: #{discriminator_loss.1} parent=1 // pred_check
      _
    $region23: #{discriminator_loss.1} parent=1 // pred_check_branch
      %88 = sbr.rel (0) target = $region25
    $region24: #{discriminator_loss.1} parent=1 // pred_region
      %89 = dma.done [#allocation4], 16
    $region25: #{discriminator_loss.1} parent=1 // pred_fallthru
      _
    %90 = sfence
    %91 = vsyncpa [#allocation4], 1

</llo_original>
